<compile_context>
chip_gen: v5e
topology: v5e:2x2
jax: 0.10.0
libtpu: 0.0.40
codegen_flags: <defaults>
</compile_context>

<pallas_src>
import functools

import jax
import jax.numpy as jnp
from jax.experimental import pallas as pl
from jax.experimental.pallas import tpu as pltpu


def _round_up(v, m):
    return (v + m - 1) // m * m


def mlp_kernel(x_ref, w1_ref, b1_ref, w2_ref, b2_ref, w3_ref, b3_ref, o_ref):
    # Layer 1: bf16 MXU inputs, f32 accumulation; bias/ReLU on VPU in f32.
    h1 = jnp.dot(x_ref[...], w1_ref[...], preferred_element_type=jnp.float32)
    h1 = jnp.maximum(h1 + b1_ref[...], 0.0)
    # Layer 2
    h2 = jnp.dot(h1.astype(jnp.bfloat16), w2_ref[...],
                 preferred_element_type=jnp.float32)
    h2 = jnp.maximum(h2 + b2_ref[...], 0.0)
    # Layer 3 (logits) -- output dim is unpadded, so no column masking needed.
    logits = jnp.dot(h2.astype(jnp.bfloat16), w3_ref[...],
                     preferred_element_type=jnp.float32) + b3_ref[...]
    # Numerically-stable softmax over the last dim (f32; exact division so rows
    # sum to 1 to f32 precision).
    m = jnp.max(logits, axis=-1, keepdims=True)
    e = jnp.exp(logits - m)
    denom = jnp.sum(e, axis=-1, keepdims=True)
    o_ref[...] = (e / denom).astype(o_ref.dtype)


def pack_params(w1, b1, w2, b2, w3, b3):
    """One-time packing: pad hidden dims to 128 lanes, cast weights to bf16.

    Done once outside the per-call path so the jitted forward never re-reads /
    re-writes the weights for padding or casting.
    """
    d_in, d_h0 = w1.shape
    d_h1 = w2.shape[1]
    d_out = w3.shape[1]
    d_h0_p = _round_up(d_h0, 128)
    d_h1_p = _round_up(d_h1, 128)

    def pad2(a, rows, cols, dtype):
        a = jnp.asarray(a, dtype)
        return jnp.pad(a, ((0, rows - a.shape[0]), (0, cols - a.shape[1])))

    # Zero padding is semantics-preserving through matmul + bias + ReLU
    # (padded hidden activations are exactly 0).
    w1_p = pad2(w1, d_in, d_h0_p, jnp.bfloat16)
    w2_p = pad2(w2, d_h0_p, d_h1_p, jnp.bfloat16)
    w3_p = pad2(w3, d_h1_p, d_out, jnp.bfloat16)
    b1_p = pad2(jnp.reshape(b1, (1, -1)), 1, d_h0_p, jnp.float32)
    b2_p = pad2(jnp.reshape(b2, (1, -1)), 1, d_h1_p, jnp.float32)
    b3_p = pad2(jnp.reshape(b3, (1, -1)), 1, d_out, jnp.float32)
    return w1_p, b1_p, w2_p, b2_p, w3_p, b3_p


def _vmem_cap_bytes():
    # Generation-aware VMEM ceiling with headroom: ~51 MiB on v7x (64 MiB/TC),
    # ~102 MiB on v5e/v6e (128 MiB). Conservative fallback if the query fails
    # (e.g. interpret mode / no TPU info available).
    try:
        return int(pltpu.get_tpu_info().vmem_capacity_bytes * 0.8)
    except Exception:
        return 48 * 1024 * 1024


@functools.partial(jax.jit, static_argnames=("block_b",))
def mlp_forward(x, w1_p, b1_p, w2_p, b2_p, w3_p, b3_p, *, block_b=512):
    B, d_in = x.shape
    d_h0_p = w1_p.shape[1]
    d_h1_p = w2_p.shape[1]
    d_out = w3_p.shape[1]

    # Pad batch only to a sublane multiple (<= 7 wasted rows). The remainder is
    # a partial last grid step: rows are independent (matmuls + row-wise
    # softmax), OOB output writes are masked, so garbage rows are simply never
    # written / discarded.
    B_p = _round_up(B, 8)

    vmem_cap = _vmem_cap_bytes()
    resident_bytes = ((w1_p.size + w2_p.size + w3_p.size) * 2
                      + (b1_p.size + b2_p.size + b3_p.size) * 4)

    def budget(blk):
        # resident weights + double-buffered x/out tiles + live f32
        # intermediates + fixed margin for compiler internals.
        tile_bytes = 2 * blk * d_in * 2 + 2 * blk * d_out * 4
        live_bytes = 2 * blk * (d_h0_p + d_h1_p + d_out) * 4
        return resident_bytes + tile_bytes + live_bytes + 4 * 1024 * 1024

    # Large default batch tile (amortizes ~0.35us/step overhead), shrunk until
    # the VMEM budget fits under the generation-aware cap.
    blk = max(8, (min(block_b, B_p) // 8) * 8)
    while blk > 8 and budget(blk) > vmem_cap:
        blk = max(8, (blk // 2 // 8) * 8)
    # v7x has 2 TensorCores: ensure the (parallel) batch grid has >= 2 steps
    # when there is enough batch to split, so both cores get work.
    if B_p > 8 and pl.cdiv(B_p, blk) < 2:
        blk = max(8, _round_up(pl.cdiv(B_p, 2), 8))

    grid = (pl.cdiv(B_p, blk),)
    vmem_limit = int(min(vmem_cap, max(16 * 1024 * 1024, budget(blk))))

    # x: bf16 MXU input; feature dim left unpadded (block last dim == full dim).
    x_p = jnp.pad(x.astype(jnp.bfloat16), ((0, B_p - B), (0, 0)))

    # Weights/biases are grid-invariant: keep them resident and single-buffered
    # (no re-DMA, half the VMEM of default double buffering).
    def resident(shape):
        return pl.BlockSpec(shape, lambda i, _s=shape: (0,) * len(_s),
                            pipeline_mode=pl.Buffered(1))

    flops = 2 * B_p * (d_in * d_h0_p + d_h0_p * d_h1_p + d_h1_p * d_out)
    bytes_accessed = (x_p.size * 2
                      + (w1_p.size + w2_p.size + w3_p.size) * 2
                      + (b1_p.size + b2_p.size + b3_p.size) * 4
                      + B_p * d_out * 4)

    out_padded = pl.pallas_call(
        mlp_kernel,
        out_shape=jax.ShapeDtypeStruct((B_p, d_out), jnp.float32),
        grid_spec=pltpu.PrefetchScalarGridSpec(
            num_scalar_prefetch=0,
            grid=grid,
            in_specs=[
                pl.BlockSpec((blk, d_in), lambda i: (i, 0)),   # x tile (narrow lanes)
                resident((d_in, d_h0_p)),    # w1 (resident, single-buffered)
                resident((1, d_h0_p)),       # b1
                resident((d_h0_p, d_h1_p)),  # w2
                resident((1, d_h1_p)),       # b2
                resident((d_h1_p, d_out)),   # w3 (narrow output dim, unpadded)
                resident((1, d_out)),        # b3
            ],
            out_specs=pl.BlockSpec((blk, d_out), lambda i: (i, 0)),
        ),
        compiler_params=pltpu.CompilerParams(
            dimension_semantics=("parallel",),
            vmem_limit_bytes=vmem_limit,
        ),
        cost_estimate=pl.CostEstimate(
            flops=flops,
            transcendentals=B_p * d_out,
            bytes_accessed=bytes_accessed,
        ),
    )(x_p, w1_p, b1_p, w2_p, b2_p, w3_p, b3_p)

    return out_padded[:B]


def xavier_uniform(key, fan_in, fan_out, dtype=jnp.float32):
    # Matches torch.nn.init.xavier_uniform_ (gain=1.0); PyTorch weight is
    # [out, in], generate in that shape then transpose to our [in, out] layout.
    bound = float(jnp.sqrt(6.0 / (fan_in + fan_out)))
    w = jax.random.uniform(key, (fan_out, fan_in), dtype, -bound, bound)
    return w.T


def reference_forward(x, w1, b1, w2, b2, w3, b3):
    h1 = jnp.maximum(x @ w1 + b1, 0.0)
    h2 = jnp.maximum(h1 @ w2 + b2, 0.0)
    logits = h2 @ w3 + b3
    return jax.nn.softmax(logits, axis=-1)


if __name__ == "__main__":
    # Module-consistent shapes; batch is NOT a multiple of the tile so the
    # partial-last-block path is exercised, and the grid has >= 2 steps.
    B = 200
    input_dim = 32
    hidden_dim = (64, 32)
    output_dim = 16

    key = jax.random.PRNGKey(0)
    kx, k1, k2, k3 = jax.random.split(key, 4)

    x = jax.random.normal(kx, (B, input_dim), jnp.float32)

    w1 = xavier_uniform(k1, input_dim, hidden_dim[0])
    b1 = jnp.full((1, hidden_dim[0]), 0.01, jnp.float32)
    w2 = xavier_uniform(k2, hidden_dim[0], hidden_dim[1])
    b2 = jnp.full((1, hidden_dim[1]), 0.01, jnp.float32)
    w3 = xavier_uniform(k3, hidden_dim[1], output_dim)
    b3 = jnp.full((1, output_dim), 0.01, jnp.float32)

    # One-time packing (padding + bf16 cast), hoisted out of the per-call path.
    packed = pack_params(w1, b1, w2, b2, w3, b3)

    out = mlp_forward(x, *packed, block_b=128)
    out = jax.block_until_ready(out)

    ref = reference_forward(x, w1, b1, w2, b2, w3, b3)
    assert out.shape == (B, output_dim)
    # bf16 MXU inputs with f32 accumulation -> slightly looser tolerance than
    # the pure-f32 reference (documented precision tradeoff).
    assert jnp.allclose(out, ref, atol=3e-2, rtol=3e-2), "mismatch vs reference"
    # Exact f32 division in the kernel -> row sums are 1 to f32 precision.
    assert jnp.allclose(jnp.sum(out, axis=-1), 1.0, atol=1e-4), (
        "softmax rows must sum to 1")

    print("KERNEL_OK")
</pallas_src>

<mosaic_0001>
module attributes {stable_mosaic.version = 11 : i64} {
  func.func @mlp_kernel(%arg0: i32, %arg1: memref<128x32xbf16, #tpu.memory_space<vmem>>, %arg2: memref<32x128xbf16, #tpu.memory_space<vmem>>, %arg3: memref<1x128xf32, #tpu.memory_space<vmem>>, %arg4: memref<128x128xbf16, #tpu.memory_space<vmem>>, %arg5: memref<1x128xf32, #tpu.memory_space<vmem>>, %arg6: memref<128x16xbf16, #tpu.memory_space<vmem>>, %arg7: memref<1x16xf32, #tpu.memory_space<vmem>>, %arg8: memref<128x16xf32, #tpu.memory_space<vmem>>) attributes {dimension_semantics = [#tpu.dimension_semantics<parallel>], iteration_bounds = array<i64: 2>, scalar_prefetch = 0 : i64, scratch_operands = 0 : i64, tpu.core_type = #tpu.core_type<tc>, window_params = [{transform_indices = @transform_0, window_bounds = array<i64: 128, 32>}, {pipeline_mode = #tpu.pipeline_mode<synchronous>, transform_indices = @transform_1, window_bounds = array<i64: 32, 128>}, {pipeline_mode = #tpu.pipeline_mode<synchronous>, transform_indices = @transform_2, window_bounds = array<i64: 1, 128>}, {pipeline_mode = #tpu.pipeline_mode<synchronous>, transform_indices = @transform_3, window_bounds = array<i64: 128, 128>}, {pipeline_mode = #tpu.pipeline_mode<synchronous>, transform_indices = @transform_4, window_bounds = array<i64: 1, 128>}, {pipeline_mode = #tpu.pipeline_mode<synchronous>, transform_indices = @transform_5, window_bounds = array<i64: 128, 16>}, {pipeline_mode = #tpu.pipeline_mode<synchronous>, transform_indices = @transform_6, window_bounds = array<i64: 1, 16>}, {transform_indices = @transform_7, window_bounds = array<i64: 128, 16>}]} {
    %c0 = arith.constant 0 : index
    %c0_0 = arith.constant 0 : index
    %0 = vector.load %arg1[%c0, %c0_0] : memref<128x32xbf16, #tpu.memory_space<vmem>>, vector<128x32xbf16>
    %c0_1 = arith.constant 0 : index
    %c0_2 = arith.constant 0 : index
    %1 = vector.load %arg2[%c0_1, %c0_2] : memref<32x128xbf16, #tpu.memory_space<vmem>>, vector<32x128xbf16>
    %cst = arith.constant dense<0.000000e+00> : vector<128x128xf32>
    %2 = tpu.matmul %0, %1, %cst {dimension_numbers = #tpu.dot_dimension_numbers<[1], [0], [0], [1], [0, 0, 1, 1], [], []>} : vector<128x32xbf16>, vector<32x128xbf16>, vector<128x128xf32> -> vector<128x128xf32>
    %c0_3 = arith.constant 0 : index
    %c0_4 = arith.constant 0 : index
    %3 = vector.load %arg3[%c0_3, %c0_4] : memref<1x128xf32, #tpu.memory_space<vmem>>, vector<1x128xf32>
    %4 = vector.broadcast %3 : vector<1x128xf32> to vector<128x128xf32>
    %5 = arith.addf %2, %4 : vector<128x128xf32>
    %cst_5 = arith.constant 0.000000e+00 : f32
    %6 = vector.broadcast %cst_5 : f32 to vector<128x128xf32>
    %7 = arith.maximumf %5, %6 : vector<128x128xf32>
    %8 = arith.truncf %7 : vector<128x128xf32> to vector<128x128xbf16>
    %c0_6 = arith.constant 0 : index
    %c0_7 = arith.constant 0 : index
    %9 = vector.load %arg4[%c0_6, %c0_7] : memref<128x128xbf16, #tpu.memory_space<vmem>>, vector<128x128xbf16>
    %cst_8 = arith.constant dense<0.000000e+00> : vector<128x128xf32>
    %10 = tpu.matmul %8, %9, %cst_8 {dimension_numbers = #tpu.dot_dimension_numbers<[1], [0], [0], [1], [0, 0, 1, 1], [], []>} : vector<128x128xbf16>, vector<128x128xbf16>, vector<128x128xf32> -> vector<128x128xf32>
    %c0_9 = arith.constant 0 : index
    %c0_10 = arith.constant 0 : index
    %11 = vector.load %arg5[%c0_9, %c0_10] : memref<1x128xf32, #tpu.memory_space<vmem>>, vector<1x128xf32>
    %12 = vector.broadcast %11 : vector<1x128xf32> to vector<128x128xf32>
    %13 = arith.addf %10, %12 : vector<128x128xf32>
    %cst_11 = arith.constant 0.000000e+00 : f32
    %14 = vector.broadcast %cst_11 : f32 to vector<128x128xf32>
    %15 = arith.maximumf %13, %14 : vector<128x128xf32>
    %16 = arith.truncf %15 : vector<128x128xf32> to vector<128x128xbf16>
    %c0_12 = arith.constant 0 : index
    %c0_13 = arith.constant 0 : index
    %17 = vector.load %arg6[%c0_12, %c0_13] : memref<128x16xbf16, #tpu.memory_space<vmem>>, vector<128x16xbf16>
    %cst_14 = arith.constant dense<0.000000e+00> : vector<128x16xf32>
    %18 = tpu.matmul %16, %17, %cst_14 {dimension_numbers = #tpu.dot_dimension_numbers<[1], [0], [0], [1], [0, 0, 1, 1], [], []>} : vector<128x128xbf16>, vector<128x16xbf16>, vector<128x16xf32> -> vector<128x16xf32>
    %c0_15 = arith.constant 0 : index
    %c0_16 = arith.constant 0 : index
    %19 = vector.load %arg7[%c0_15, %c0_16] : memref<1x16xf32, #tpu.memory_space<vmem>>, vector<1x16xf32>
    %20 = vector.broadcast %19 : vector<1x16xf32> to vector<128x16xf32>
    %21 = arith.addf %18, %20 : vector<128x16xf32>
    %cst_17 = arith.constant dense<0xFF800000> : vector<128xf32>
    %22 = vector.multi_reduction <maximumf>, %21, %cst_17 [1] : vector<128x16xf32> to vector<128xf32>
    %23 = vector.shape_cast %22 : vector<128xf32> to vector<128x1xf32>
    %24 = vector.broadcast %23 : vector<128x1xf32> to vector<128x16xf32>
    %25 = arith.subf %21, %24 : vector<128x16xf32>
    %26 = math.exp %25 : vector<128x16xf32>
    %cst_18 = arith.constant dense<0.000000e+00> : vector<128xf32>
    %27 = vector.multi_reduction <add>, %26, %cst_18 [1] : vector<128x16xf32> to vector<128xf32>
    %28 = vector.shape_cast %27 : vector<128xf32> to vector<128x1xf32>
    %29 = vector.broadcast %28 : vector<128x1xf32> to vector<128x16xf32>
    %30 = arith.divf %26, %29 : vector<128x16xf32>
    %c0_19 = arith.constant 0 : index
    %c0_20 = arith.constant 0 : index
    %31 = vector.load %arg8[%c0_19, %c0_20] : memref<128x16xf32, #tpu.memory_space<vmem>>, vector<128x16xf32>
    tpu.vector_store %arg8[%c0_19, %c0_20], %30 {strides = array<i32>} : memref<128x16xf32, #tpu.memory_space<vmem>>, vector<128x16xf32>,
    return
  }
  func.func @transform_0(%arg0: i32) -> (i32, i32) {
    %c0_i32 = arith.constant 0 : i32
    %c0_i32_0 = arith.constant 0 : i32
    return %arg0, %c0_i32 : i32, i32
  }
  func.func @transform_1(%arg0: i32) -> (i32, i32) {
    %c0_i32 = arith.constant 0 : i32
    %c0_i32_0 = arith.constant 0 : i32
    %c0_i32_1 = arith.constant 0 : i32
    return %c0_i32, %c0_i32_0 : i32, i32
  }
  func.func @transform_2(%arg0: i32) -> (i32, i32) {
    %c0_i32 = arith.constant 0 : i32
    %c0_i32_0 = arith.constant 0 : i32
    %c0_i32_1 = arith.constant 0 : i32
    return %c0_i32, %c0_i32_0 : i32, i32
  }
  func.func @transform_3(%arg0: i32) -> (i32, i32) {
    %c0_i32 = arith.constant 0 : i32
    %c0_i32_0 = arith.constant 0 : i32
    %c0_i32_1 = arith.constant 0 : i32
    return %c0_i32, %c0_i32_0 : i32, i32
  }
  func.func @transform_4(%arg0: i32) -> (i32, i32) {
    %c0_i32 = arith.constant 0 : i32
    %c0_i32_0 = arith.constant 0 : i32
    %c0_i32_1 = arith.constant 0 : i32
    return %c0_i32, %c0_i32_0 : i32, i32
  }
  func.func @transform_5(%arg0: i32) -> (i32, i32) {
    %c0_i32 = arith.constant 0 : i32
    %c0_i32_0 = arith.constant 0 : i32
    %c0_i32_1 = arith.constant 0 : i32
    return %c0_i32, %c0_i32_0 : i32, i32
  }
  func.func @transform_6(%arg0: i32) -> (i32, i32) {
    %c0_i32 = arith.constant 0 : i32
    %c0_i32_0 = arith.constant 0 : i32
    %c0_i32_1 = arith.constant 0 : i32
    return %c0_i32, %c0_i32_0 : i32, i32
  }
  func.func @transform_7(%arg0: i32) -> (i32, i32) {
    %c0_i32 = arith.constant 0 : i32
    %c0_i32_0 = arith.constant 0 : i32
    return %arg0, %c0_i32 : i32, i32
  }
}

</mosaic_0001>

<llo_original>
// kernel: mlp_forward.1
$region0: #{mlp_forward.1}
  #allocation0 [shape = 'u32[]', space=smem, size = 0x4, offset = 0x4, fixed_abs, tag = 'smem constant byte address 0x4 - core index']
  #allocation1 [shape = 'u32[72,128]{1,0:T(1,128)}', space=vmem, size = 0x9000, scoped, tag = 'internal scratch']
  %s0 = inlined_call_operand.vmem [shape: bf16[200,32], index: 0, kind: input, shape index: {}]
  %s1 = inlined_call_operand.vmem [shape: bf16[32,128], index: 1, kind: input, shape index: {}]
  %s2 = inlined_call_operand.vmem [shape: f32[1,128], index: 2, kind: input, shape index: {}]
  %s3 = inlined_call_operand.vmem [shape: bf16[128,128], index: 3, kind: input, shape index: {}]
  %s4 = inlined_call_operand.vmem [shape: f32[1,128], index: 4, kind: input, shape index: {}]
  %s5 = inlined_call_operand.vmem [shape: bf16[128,16], index: 5, kind: input, shape index: {}]
  %s6 = inlined_call_operand.vmem [shape: f32[1,16], index: 6, kind: input, shape index: {}]
  %s7 = inlined_call_operand.vmem [shape: f32[200,16], index: 7, kind: output, shape index: {}]
  %s8 = sld [smem:[#allocation0]]
  $region109: #{mlp_forward.1} parent=0
    _
  %s10 = ssub.s32 1, %s8
  %s11 = scalar_select 0, %s10, %s8
  $region1: #{mlp_forward.1} parent=0
    #allocation2 [shape = 'u8[131072]{0}', space=vmem, size = 0x20000, scoped, tag = 'output window, operand 0']
    loop: start=0, step=1, limit=4
    $region2: #{mlp_forward.1} parent=1 // loop_pre_header
      _
    $region3: #{mlp_forward.1} parent=1 // loop_header
      %s13 = sphi 0, %s17
      %p14 = scmp.ge.s32.totalorder %s13, 4
      %s23 = sphi 0, %s25
      %s26 = sphi 0, %s23
      %s27 = sphi 0, %s26
      %s43 = sphi 0, %s27
      %s47 = sphi 0, %s47
      %s49 = sphi 0, %s47
      %s50 = sphi 0, %s49
      %s64 = sphi 0, %s50
      %s68 = sphi 0, %s68
      %s70 = sphi 0, %s68
      %s71 = sphi 0, %s70
      %s85 = sphi 0, %s71
      %s89 = sphi 0, %s89
      %s91 = sphi 0, %s89
      %s92 = sphi 0, %s91
      %s106 = sphi 0, %s92
      %s110 = sphi 0, %s110
      %s112 = sphi 0, %s110
      %s113 = sphi 0, %s112
      %s127 = sphi 0, %s113
      %s131 = sphi 0, %s131
      %s133 = sphi 0, %s131
      %s134 = sphi 0, %s133
      %s148 = sphi 0, %s134
      %s152 = sphi 0, %s152
      %s154 = sphi 0, %s152
      %s155 = sphi 0, %s154
      %s169 = sphi 0, %s155
      %s175 = sphi 0, %s177
      %s178 = sphi 0, %s175
      %s179 = sphi 0, %s178
      %s195 = sphi 0, %s179
    $region4: #{mlp_forward.1} parent=1 // loop_header_branch
      %16 = sbr.rel (%p14) target = $region8
    $region5: #{mlp_forward.1} parent=1 // loop_body
      %s18 = ssub.s32 %s13, 1
      %s19 = ssub.s32 %s13, 2
      %s20 = sadd.s32 %s13, 1
      %s21 = ssub.s32 %s13, %s20
      %p22 = scmp.eq.s32.totalorder %s21, 0
      %s24 = sadd.s32 %s23, 1
      %s25 = scalar_select %p22, %s23, %s24
      %p28 = pneg %p22
      %p29 = scmp.eq.s32.totalorder %s13, 1
      %p30 = por %p28, %p29
      %p31 = scmp.ne.s32.totalorder %s23, %s26
      %p32 = scmp.eq.s32.totalorder %s13, 0
      %p33 = por %p31, %p32
      %p34 = scmp.ne.s32.totalorder %s23, %s26
      %p35 = scmp.eq.s32.totalorder %s18, 1
      %p36 = por %p34, %p35
      %p37 = scmp.ne.s32.totalorder %s26, %s27
      %p38 = scmp.eq.s32.totalorder %s18, 0
      %p39 = por %p37, %p38
      %p40 = scmp.ne.s32.totalorder %s26, %s27
      %p41 = scmp.eq.s32.totalorder %s19, 1
      %p42 = por %p40, %p41
      %p44 = scmp.ne.s32.totalorder %s27, %s43
      %p45 = scmp.eq.s32.totalorder %s19, 0
      %p46 = por %p44, %p45
      %s48 = sadd.s32 %s47, 1
      %p51 = scmp.eq.s32.totalorder %s13, 1
      %p52 = scmp.ne.s32.totalorder %s47, %s49
      %p53 = scmp.eq.s32.totalorder %s13, 0
      %p54 = por %p52, %p53
      %p55 = scmp.ne.s32.totalorder %s47, %s49
      %p56 = scmp.eq.s32.totalorder %s18, 1
      %p57 = por %p55, %p56
      %p58 = scmp.ne.s32.totalorder %s49, %s50
      %p59 = scmp.eq.s32.totalorder %s18, 0
      %p60 = por %p58, %p59
      %p61 = scmp.ne.s32.totalorder %s49, %s50
      %p62 = scmp.eq.s32.totalorder %s19, 1
      %p63 = por %p61, %p62
      %p65 = scmp.ne.s32.totalorder %s50, %s64
      %p66 = scmp.eq.s32.totalorder %s19, 0
      %p67 = por %p65, %p66
      %s69 = sadd.s32 %s68, 1
      %p72 = scmp.eq.s32.totalorder %s13, 1
      %p73 = scmp.ne.s32.totalorder %s68, %s70
      %p74 = scmp.eq.s32.totalorder %s13, 0
      %p75 = por %p73, %p74
      %p76 = scmp.ne.s32.totalorder %s68, %s70
      %p77 = scmp.eq.s32.totalorder %s18, 1
      %p78 = por %p76, %p77
      %p79 = scmp.ne.s32.totalorder %s70, %s71
      %p80 = scmp.eq.s32.totalorder %s18, 0
      %p81 = por %p79, %p80
      %p82 = scmp.ne.s32.totalorder %s70, %s71
      %p83 = scmp.eq.s32.totalorder %s19, 1
      %p84 = por %p82, %p83
      %p86 = scmp.ne.s32.totalorder %s71, %s85
      %p87 = scmp.eq.s32.totalorder %s19, 0
      %p88 = por %p86, %p87
      %s90 = sadd.s32 %s89, 1
      %p93 = scmp.eq.s32.totalorder %s13, 1
      %p94 = scmp.ne.s32.totalorder %s89, %s91
      %p95 = scmp.eq.s32.totalorder %s13, 0
      %p96 = por %p94, %p95
      %p97 = scmp.ne.s32.totalorder %s89, %s91
      %p98 = scmp.eq.s32.totalorder %s18, 1
      %p99 = por %p97, %p98
      %p100 = scmp.ne.s32.totalorder %s91, %s92
      %p101 = scmp.eq.s32.totalorder %s18, 0
      %p102 = por %p100, %p101
      %p103 = scmp.ne.s32.totalorder %s91, %s92
      %p104 = scmp.eq.s32.totalorder %s19, 1
      %p105 = por %p103, %p104
      %p107 = scmp.ne.s32.totalorder %s92, %s106
      %p108 = scmp.eq.s32.totalorder %s19, 0
      %p109 = por %p107, %p108
      %s111 = sadd.s32 %s110, 1
      %p114 = scmp.eq.s32.totalorder %s13, 1
      %p115 = scmp.ne.s32.totalorder %s110, %s112
      %p116 = scmp.eq.s32.totalorder %s13, 0
      %p117 = por %p115, %p116
      %p118 = scmp.ne.s32.totalorder %s110, %s112
      %p119 = scmp.eq.s32.totalorder %s18, 1
      %p120 = por %p118, %p119
      %p121 = scmp.ne.s32.totalorder %s112, %s113
      %p122 = scmp.eq.s32.totalorder %s18, 0
      %p123 = por %p121, %p122
      %p124 = scmp.ne.s32.totalorder %s112, %s113
      %p125 = scmp.eq.s32.totalorder %s19, 1
      %p126 = por %p124, %p125
      %p128 = scmp.ne.s32.totalorder %s113, %s127
      %p129 = scmp.eq.s32.totalorder %s19, 0
      %p130 = por %p128, %p129
      %s132 = sadd.s32 %s131, 1
      %p135 = scmp.eq.s32.totalorder %s13, 1
      %p136 = scmp.ne.s32.totalorder %s131, %s133
      %p137 = scmp.eq.s32.totalorder %s13, 0
      %p138 = por %p136, %p137
      %p139 = scmp.ne.s32.totalorder %s131, %s133
      %p140 = scmp.eq.s32.totalorder %s18, 1
      %p141 = por %p139, %p140
      %p142 = scmp.ne.s32.totalorder %s133, %s134
      %p143 = scmp.eq.s32.totalorder %s18, 0
      %p144 = por %p142, %p143
      %p145 = scmp.ne.s32.totalorder %s133, %s134
      %p146 = scmp.eq.s32.totalorder %s19, 1
      %p147 = por %p145, %p146
      %p149 = scmp.ne.s32.totalorder %s134, %s148
      %p150 = scmp.eq.s32.totalorder %s19, 0
      %p151 = por %p149, %p150
      %s153 = sadd.s32 %s152, 1
      %p156 = scmp.eq.s32.totalorder %s13, 1
      %p157 = scmp.ne.s32.totalorder %s152, %s154
      %p158 = scmp.eq.s32.totalorder %s13, 0
      %p159 = por %p157, %p158
      %p160 = scmp.ne.s32.totalorder %s152, %s154
      %p161 = scmp.eq.s32.totalorder %s18, 1
      %p162 = por %p160, %p161
      %p163 = scmp.ne.s32.totalorder %s154, %s155
      %p164 = scmp.eq.s32.totalorder %s18, 0
      %p165 = por %p163, %p164
      %p166 = scmp.ne.s32.totalorder %s154, %s155
      %p167 = scmp.eq.s32.totalorder %s19, 1
      %p168 = por %p166, %p167
      %p170 = scmp.ne.s32.totalorder %s155, %s169
      %p171 = scmp.eq.s32.totalorder %s19, 0
      %p172 = por %p170, %p171
      %s173 = ssub.s32 %s13, %s20
      %p174 = scmp.eq.s32.totalorder %s173, 0
      %s176 = sadd.s32 %s175, 1
      %s177 = scalar_select %p174, %s175, %s176
      %p180 = pneg %p174
      %p181 = scmp.eq.s32.totalorder %s13, 1
      %p182 = por %p180, %p181
      %p183 = scmp.ne.s32.totalorder %s175, %s178
      %p184 = scmp.eq.s32.totalorder %s13, 0
      %p185 = por %p183, %p184
      %p186 = scmp.ne.s32.totalorder %s175, %s178
      %p187 = scmp.eq.s32.totalorder %s18, 1
      %p188 = por %p186, %p187
      %p189 = scmp.ne.s32.totalorder %s178, %s179
      %p190 = scmp.eq.s32.totalorder %s18, 0
      %p191 = por %p189, %p190
      %p192 = scmp.ne.s32.totalorder %s178, %s179
      %p193 = scmp.eq.s32.totalorder %s19, 1
      %p194 = por %p192, %p193
      %p196 = scmp.ne.s32.totalorder %s179, %s195
      %p197 = scmp.eq.s32.totalorder %s19, 0
      %p198 = por %p196, %p197
      %p199 = scmp.le.s32.totalorder 1, %s13
      %p200 = scmp.lt.s32.totalorder %s13, 3
      %p201 = pnand %p199, %p200
      %p202 = pneg %p201
      // Predicated region
      $region9: #{mlp_forward.1} parent=5 // pred_check
        _
      $region10: #{mlp_forward.1} parent=5 // pred_check_branch
        %204 = sbr.rel (%p201) target = $region12
      $region11: #{mlp_forward.1} parent=5 // pred_region
        %s205 = ssub.s32 %s13, 1
        // Predicated region
        $region13: #{mlp_forward.1} parent=11 // pred_check
          %p206 = pneg %p60
        $region14: #{mlp_forward.1} parent=11 // pred_check_branch
          %208 = sbr.rel (%p206) target = $region16
        $region15: #{mlp_forward.1} parent=11 // pred_region
          _
        $region16: #{mlp_forward.1} parent=11 // pred_fallthru
          _
        // Predicated region
        $region17: #{mlp_forward.1} parent=11 // pred_check
          %p209 = pneg %p81
        $region18: #{mlp_forward.1} parent=11 // pred_check_branch
          %211 = sbr.rel (%p209) target = $region20
        $region19: #{mlp_forward.1} parent=11 // pred_region
          _
        $region20: #{mlp_forward.1} parent=11 // pred_fallthru
          _
        // Predicated region
        $region21: #{mlp_forward.1} parent=11 // pred_check
          %p212 = pneg %p102
        $region22: #{mlp_forward.1} parent=11 // pred_check_branch
          %214 = sbr.rel (%p212) target = $region24
        $region23: #{mlp_forward.1} parent=11 // pred_region
          _
        $region24: #{mlp_forward.1} parent=11 // pred_fallthru
          _
        // Predicated region
        $region25: #{mlp_forward.1} parent=11 // pred_check
          %p215 = pneg %p123
        $region26: #{mlp_forward.1} parent=11 // pred_check_branch
          %217 = sbr.rel (%p215) target = $region28
        $region27: #{mlp_forward.1} parent=11 // pred_region
          _
        $region28: #{mlp_forward.1} parent=11 // pred_fallthru
          _
        // Predicated region
        $region29: #{mlp_forward.1} parent=11 // pred_check
          %p218 = pneg %p144
        $region30: #{mlp_forward.1} parent=11 // pred_check_branch
          %220 = sbr.rel (%p218) target = $region32
        $region31: #{mlp_forward.1} parent=11 // pred_region
          _
        $region32: #{mlp_forward.1} parent=11 // pred_fallthru
          _
        // Predicated region
        $region33: #{mlp_forward.1} parent=11 // pred_check
          %p221 = pneg %p165
        $region34: #{mlp_forward.1} parent=11 // pred_check_branch
          %223 = sbr.rel (%p221) target = $region36
        $region35: #{mlp_forward.1} parent=11 // pred_region
          _
        $region36: #{mlp_forward.1} parent=11 // pred_fallthru
          _
      $region12: #{mlp_forward.1} parent=5 // pred_fallthru
        _
      %p224 = scmp.lt.s32.totalorder %s13, 2
      // Predicated region
      $region37: #{mlp_forward.1} parent=5 // pred_check
        %p225 = pneg %p224
      $region38: #{mlp_forward.1} parent=5 // pred_check_branch
        %227 = sbr.rel (%p225) target = $region40
      $region39: #{mlp_forward.1} parent=5 // pred_region
        // Predicated region
        $region41: #{mlp_forward.1} parent=39 // pred_check
          %p228 = pneg %p33
        $region42: #{mlp_forward.1} parent=39 // pred_check_branch
          %230 = sbr.rel (%p228) target = $region44
        $region43: #{mlp_forward.1} parent=39 // pred_region
          %s231 = smul.u32 16, %s13
          %s232 = ssub.s32 25, %s231
          %p233 = scmp.lt.s32.totalorder %s232, 16
          %s234 = scalar_select %p233, %s232, 16
          %s235 = smul.u32 4, %s234
          %p236 = scmp.lt.s32.totalorder %s231, 24
          %s237 = scalar_select %p236, %s231, 24
          %s238 = smul.addr %s237, 4
          %s239 = scalar_lea.vmem %s0, %s238
          %s240 = smul.u32 16, %s13
          %s241 = ssub.s32 25, %s240
          %p242 = scmp.lt.s32.totalorder %s241, 16
          %s243 = scalar_select %p242, %s241, 16
          %s244 = smul.u32 4, %s243
        $region44: #{mlp_forward.1} parent=39 // pred_fallthru
          _
      $region40: #{mlp_forward.1} parent=5 // pred_fallthru
        _
      %p245 = scmp.le.s32.totalorder 1, %s13
      %p246 = scmp.lt.s32.totalorder %s13, 3
      %p247 = pnand %p245, %p246
      %p248 = pneg %p247
      // Predicated region
      $region45: #{mlp_forward.1} parent=5 // pred_check
        _
      $region46: #{mlp_forward.1} parent=5 // pred_check_branch
        %250 = sbr.rel (%p247) target = $region48
      $region47: #{mlp_forward.1} parent=5 // pred_region
        %s251 = ssub.s32 %s13, 1
        %s252 = smul.u32 16, %s18
        %s253 = ssub.s32 25, %s252
        %p254 = scmp.lt.s32.totalorder %s253, 16
        %s255 = scalar_select %p254, %s253, 16
        %s256 = smul.u32 4, %s255
        %p257 = scmp.lt.s32.totalorder %s252, 24
        %s258 = scalar_select %p257, %s252, 24
        %s259 = smul.addr %s258, 4
        %s260 = scalar_lea.vmem %s0, %s259
        %p261 = pneg %p39
        %p262 = pneg %p36
        %p263 = pneg %p60
        %p264 = pneg %p57
        %p265 = pneg %p81
        %p266 = pneg %p78
        %p267 = pneg %p102
        %p268 = pneg %p99
        %p269 = pneg %p123
        %p270 = pneg %p120
        %p271 = pneg %p144
        %p272 = pneg %p141
        %p273 = pneg %p165
        %p274 = pneg %p162
        %p275 = pneg %p191
        %p276 = pneg %p188
        %s277 = sand.u32 %s178, 1
        %s278 = sand.u32 %s178, 1
        %s279 = smul.addr %s278, 128
        %s280 = scalar_lea.vmem [#allocation2], %s279
        %s281 = smul.u32 16, %s18
        %s282 = ssub.s32 25, %s281
        %p283 = scmp.lt.s32.totalorder %s282, 16
        %s284 = scalar_select %p283, %s282, 16
        %s285 = smul.u32 4, %s284
        %p286 = scmp.lt.s32.totalorder %s281, 24
        %s287 = scalar_select %p286, %s281, 24
        %s288 = smul.addr %s287, 4
        %s289 = scalar_lea.vmem %s0, %s288
        %s290 = smul.u32 16, %s18
        %s291 = ssub.s32 25, %s290
        %p292 = scmp.lt.s32.totalorder %s291, 16
        %s293 = scalar_select %p292, %s291, 16
        %s294 = smul.u32 4, %s293
        %s295 = smul.u32 16, %s18
        %s296 = ssub.s32 25, %s295
        %p297 = scmp.lt.s32.totalorder %s296, 16
        %s298 = scalar_select %p297, %s296, 16
        %s299 = smul.u32 8, %s298
        %v301 = vld [vmem:[%s289] sm:$0xf]
        %v302 = vld [vmem:[%s289 + $0x4] sm:$0xf]
        %v303 = vld [vmem:[%s289 + $0x8] sm:$0xf]
        %v304 = vld [vmem:[%s289 + $0xc] sm:$0xf]
        %v305 = vld [vmem:[%s289 + $0x10] sm:$0xf]
        %v306 = vld [vmem:[%s289 + $0x14] sm:$0xf]
        %v307 = vld [vmem:[%s289 + $0x18] sm:$0xf]
        %v308 = vld [vmem:[%s289 + $0x1c] sm:$0xf]
        %v309 = vld [vmem:[%s289 + $0x20] sm:$0xf]
        %v310 = vld [vmem:[%s289 + $0x24] sm:$0xf]
        %v311 = vld [vmem:[%s289 + $0x28] sm:$0xf]
        %v312 = vld [vmem:[%s289 + $0x2c] sm:$0xf]
        %v313 = vld [vmem:[%s289 + $0x30] sm:$0xf]
        %v314 = vld [vmem:[%s289 + $0x34] sm:$0xf]
        %v315 = vld [vmem:[%s289 + $0x38] sm:$0xf]
        %v316 = vld [vmem:[%s289 + $0x3c] sm:$0xf]
        %v317 = vld [vmem:[%s1] sm:$0xf]
        %v318 = vld [vmem:[%s1 + $0x4] sm:$0xf]
        %v319 = vld [vmem:[%s1 + $0x8] sm:$0xf]
        %v320 = vld [vmem:[%s1 + $0xc] sm:$0xf]
        %v321 = vld [vmem:[%s2] sm:$0x1]
        %v323 = vperm.slane %v321, 0
        %v341 = vunpack.c.l.b16 %v301
        %v342 = vunpack.c.l.b16 %v302
        %v343 = vunpack.c.l.b16 %v303
        %v344 = vunpack.c.l.b16 %v304
        %v345 = vunpack.c.l.b16 %v305
        %v346 = vunpack.c.l.b16 %v306
        %v347 = vunpack.c.l.b16 %v307
        %v348 = vunpack.c.l.b16 %v308
        %v349 = vunpack.c.l.b16 %v309
        %v350 = vunpack.c.l.b16 %v310
        %v351 = vunpack.c.l.b16 %v311
        %v352 = vunpack.c.l.b16 %v312
        %v353 = vunpack.c.l.b16 %v313
        %v354 = vunpack.c.l.b16 %v314
        %v355 = vunpack.c.l.b16 %v315
        %v356 = vunpack.c.l.b16 %v316
        %v357 = vpack.c.b16 %v342, %v341
        %v358 = vpack.c.b16 %v344, %v343
        %v359 = vpack.c.b16 %v346, %v345
        %v360 = vpack.c.b16 %v348, %v347
        %v361 = vpack.c.b16 %v350, %v349
        %v362 = vpack.c.b16 %v352, %v351
        %v363 = vpack.c.b16 %v354, %v353
        %v364 = vpack.c.b16 %v356, %v355
        %v369 = vunpack.c.l.b16 %v317
        %v370 = vunpack.c.l.b16 %v318
        %v371 = vunpack.c.l.b16 %v319
        %v372 = vunpack.c.l.b16 %v320
        %v373 = vpack.c.b16 %v370, %v369
        %v374 = vpack.c.b16 %v372, %v371
        %vm377 = vcmask 261120
        %v379 = vsel %vm377, %v357, 0
        %v382 = vsel %vm377, %v358, 0
        %v385 = vsel %vm377, %v359, 0
        %v388 = vsel %vm377, %v360, 0
        %v391 = vsel %vm377, %v361, 0
        %v394 = vsel %vm377, %v362, 0
        %v397 = vsel %vm377, %v363, 0
        %v400 = vsel %vm377, %v364, 0
        %402 = vmatpush.bf16.msra.mxu0 0
        %403 = vmatpush.bf16.msra.mxu0 0
        %404 = vmatpush.bf16.msra.mxu0 0
        %405 = vmatpush.bf16.msra.mxu0 0
        %406 = vmatpush.bf16.msra.mxu0 0
        %407 = vmatpush.bf16.msra.mxu0 0
        %408 = vmatpush.bf16.msra.mxu0 %v374
        %409 = vmatpush.bf16.msra.mxu0 %v373
        %410 = vmatmul.bf16.gmra.mxu0 %v379
        %v411 = vpop.f32.mrf.mxu0
        %v412 = vadd.f32 %v323, %v411
        %v413 = vpop.f32.mrf.mxu0
        %v414 = vadd.f32 %v323, %v413
        %415 = vmatmul.bf16.gmra.mxu0 %v382
        %v416 = vpop.f32.mrf.mxu0
        %v417 = vadd.f32 %v323, %v416
        %v418 = vpop.f32.mrf.mxu0
        %v419 = vadd.f32 %v323, %v418
        %420 = vmatmul.bf16.gmra.mxu0 %v385
        %v421 = vpop.f32.mrf.mxu0
        %v422 = vadd.f32 %v323, %v421
        %v423 = vpop.f32.mrf.mxu0
        %v424 = vadd.f32 %v323, %v423
        %425 = vmatmul.bf16.gmra.mxu0 %v388
        %v426 = vpop.f32.mrf.mxu0
        %v427 = vadd.f32 %v323, %v426
        %v428 = vpop.f32.mrf.mxu0
        %v429 = vadd.f32 %v323, %v428
        %430 = vmatmul.bf16.gmra.mxu0 %v391
        %v431 = vpop.f32.mrf.mxu0
        %v432 = vadd.f32 %v323, %v431
        %v433 = vpop.f32.mrf.mxu0
        %v434 = vadd.f32 %v323, %v433
        %435 = vmatmul.bf16.gmra.mxu0 %v394
        %v436 = vpop.f32.mrf.mxu0
        %v437 = vadd.f32 %v323, %v436
        %v438 = vpop.f32.mrf.mxu0
        %v439 = vadd.f32 %v323, %v438
        %440 = vmatmul.bf16.gmra.mxu0 %v397
        %v441 = vpop.f32.mrf.mxu0
        %v442 = vadd.f32 %v323, %v441
        %v443 = vpop.f32.mrf.mxu0
        %v444 = vadd.f32 %v323, %v443
        %445 = vmatmul.bf16.gmra.mxu0 %v400
        %v446 = vpop.f32.mrf.mxu0
        %v447 = vadd.f32 %v323, %v446
        %v448 = vpop.f32.mrf.mxu0
        %v449 = vadd.f32 %v323, %v448
        %450 = vdwg.mxu0
        %v451 = vmax.f32 %v412, 0.0
        %v452 = vmax.f32 %v414, 0.0
        %v453 = vmax.f32 %v417, 0.0
        %v454 = vmax.f32 %v419, 0.0
        %v455 = vmax.f32 %v422, 0.0
        %v456 = vmax.f32 %v424, 0.0
        %v457 = vmax.f32 %v427, 0.0
        %v458 = vmax.f32 %v429, 0.0
        %v459 = vmax.f32 %v432, 0.0
        %v460 = vmax.f32 %v434, 0.0
        %v461 = vmax.f32 %v437, 0.0
        %v462 = vmax.f32 %v439, 0.0
        %v463 = vmax.f32 %v442, 0.0
        %v464 = vmax.f32 %v444, 0.0
        %v465 = vmax.f32 %v447, 0.0
        %v466 = vmax.f32 %v449, 0.0
        %v467 = vpack.c.bf16 %v452, %v451
        %v468 = vpack.c.bf16 %v454, %v453
        %v469 = vpack.c.bf16 %v456, %v455
        %v470 = vpack.c.bf16 %v458, %v457
        %v471 = vpack.c.bf16 %v460, %v459
        %v472 = vpack.c.bf16 %v462, %v461
        %v473 = vpack.c.bf16 %v464, %v463
        %v474 = vpack.c.bf16 %v466, %v465
        %v475 = vld [vmem:[%s3] sm:$0xf]
        %v476 = vld [vmem:[%s3 + $0x4] sm:$0xf]
        %v477 = vld [vmem:[%s3 + $0x8] sm:$0xf]
        %v478 = vld [vmem:[%s3 + $0xc] sm:$0xf]
        %v479 = vld [vmem:[%s3 + $0x10] sm:$0xf]
        %v480 = vld [vmem:[%s3 + $0x14] sm:$0xf]
        %v481 = vld [vmem:[%s3 + $0x18] sm:$0xf]
        %v482 = vld [vmem:[%s3 + $0x1c] sm:$0xf]
        %v483 = vld [vmem:[%s3 + $0x20] sm:$0xf]
        %v484 = vld [vmem:[%s3 + $0x24] sm:$0xf]
        %v485 = vld [vmem:[%s3 + $0x28] sm:$0xf]
        %v486 = vld [vmem:[%s3 + $0x2c] sm:$0xf]
        %v487 = vld [vmem:[%s3 + $0x30] sm:$0xf]
        %v488 = vld [vmem:[%s3 + $0x34] sm:$0xf]
        %v489 = vld [vmem:[%s3 + $0x38] sm:$0xf]
        %v490 = vld [vmem:[%s3 + $0x3c] sm:$0xf]
        %v491 = vld [vmem:[%s4] sm:$0x1]
        %v493 = vperm.slane %v491, 0
        %v511 = vunpack.c.l.b16 %v475
        %v512 = vunpack.c.l.b16 %v476
        %v513 = vunpack.c.l.b16 %v477
        %v514 = vunpack.c.l.b16 %v478
        %v515 = vunpack.c.l.b16 %v479
        %v516 = vunpack.c.l.b16 %v480
        %v517 = vunpack.c.l.b16 %v481
        %v518 = vunpack.c.l.b16 %v482
        %v519 = vunpack.c.l.b16 %v483
        %v520 = vunpack.c.l.b16 %v484
        %v521 = vunpack.c.l.b16 %v485
        %v522 = vunpack.c.l.b16 %v486
        %v523 = vunpack.c.l.b16 %v487
        %v524 = vunpack.c.l.b16 %v488
        %v525 = vunpack.c.l.b16 %v489
        %v526 = vunpack.c.l.b16 %v490
        %v527 = vpack.c.b16 %v512, %v511
        %v528 = vpack.c.b16 %v514, %v513
        %v529 = vpack.c.b16 %v516, %v515
        %v530 = vpack.c.b16 %v518, %v517
        %v531 = vpack.c.b16 %v520, %v519
        %v532 = vpack.c.b16 %v522, %v521
        %v533 = vpack.c.b16 %v524, %v523
        %v534 = vpack.c.b16 %v526, %v525
        %543 = vmatpush.bf16.msra.mxu0 %v534
        %544 = vmatpush.bf16.msra.mxu0 %v533
        %545 = vmatpush.bf16.msra.mxu0 %v532
        %546 = vmatpush.bf16.msra.mxu0 %v531
        %547 = vmatpush.bf16.msra.mxu0 %v530
        %548 = vmatpush.bf16.msra.mxu0 %v529
        %549 = vmatpush.bf16.msra.mxu0 %v528
        %550 = vmatpush.bf16.msra.mxu0 %v527
        %551 = vmatmul.bf16.gmra.mxu0 %v467
        %v552 = vpop.f32.mrf.mxu0
        %v553 = vadd.f32 %v493, %v552
        %v554 = vpop.f32.mrf.mxu0
        %v555 = vadd.f32 %v493, %v554
        %556 = vmatmul.bf16.gmra.mxu0 %v468
        %v557 = vpop.f32.mrf.mxu0
        %v558 = vadd.f32 %v493, %v557
        %v559 = vpop.f32.mrf.mxu0
        %v560 = vadd.f32 %v493, %v559
        %561 = vmatmul.bf16.gmra.mxu0 %v469
        %v562 = vpop.f32.mrf.mxu0
        %v563 = vadd.f32 %v493, %v562
        %v564 = vpop.f32.mrf.mxu0
        %v565 = vadd.f32 %v493, %v564
        %566 = vmatmul.bf16.gmra.mxu0 %v470
        %v567 = vpop.f32.mrf.mxu0
        %v568 = vadd.f32 %v493, %v567
        %v569 = vpop.f32.mrf.mxu0
        %v570 = vadd.f32 %v493, %v569
        %571 = vmatmul.bf16.gmra.mxu0 %v471
        %v572 = vpop.f32.mrf.mxu0
        %v573 = vadd.f32 %v493, %v572
        %v574 = vpop.f32.mrf.mxu0
        %v575 = vadd.f32 %v493, %v574
        %576 = vmatmul.bf16.gmra.mxu0 %v472
        %v577 = vpop.f32.mrf.mxu0
        %v578 = vadd.f32 %v493, %v577
        %v579 = vpop.f32.mrf.mxu0
        %v580 = vadd.f32 %v493, %v579
        %581 = vmatmul.bf16.gmra.mxu0 %v473
        %v582 = vpop.f32.mrf.mxu0
        %v583 = vadd.f32 %v493, %v582
        %v584 = vpop.f32.mrf.mxu0
        %v585 = vadd.f32 %v493, %v584
        %586 = vmatmul.bf16.gmra.mxu0 %v474
        %v587 = vpop.f32.mrf.mxu0
        %v588 = vadd.f32 %v493, %v587
        %v589 = vpop.f32.mrf.mxu0
        %v590 = vadd.f32 %v493, %v589
        %591 = vdwg.mxu0
        %v592 = vmax.f32 %v553, 0.0
        %v593 = vmax.f32 %v555, 0.0
        %v594 = vmax.f32 %v558, 0.0
        %v595 = vmax.f32 %v560, 0.0
        %v596 = vmax.f32 %v563, 0.0
        %v597 = vmax.f32 %v565, 0.0
        %v598 = vmax.f32 %v568, 0.0
        %v599 = vmax.f32 %v570, 0.0
        %v600 = vmax.f32 %v573, 0.0
        %v601 = vmax.f32 %v575, 0.0
        %v602 = vmax.f32 %v578, 0.0
        %v603 = vmax.f32 %v580, 0.0
        %v604 = vmax.f32 %v583, 0.0
        %v605 = vmax.f32 %v585, 0.0
        %v606 = vmax.f32 %v588, 0.0
        %v607 = vmax.f32 %v590, 0.0
        %v608 = vpack.c.bf16 %v593, %v592
        %v609 = vpack.c.bf16 %v595, %v594
        %v610 = vpack.c.bf16 %v597, %v596
        %v611 = vpack.c.bf16 %v599, %v598
        %v612 = vpack.c.bf16 %v601, %v600
        %v613 = vpack.c.bf16 %v603, %v602
        %v614 = vpack.c.bf16 %v605, %v604
        %v615 = vpack.c.bf16 %v607, %v606
        %v616 = vld [vmem:[%s5] sm:$0xf]
        %v617 = vld [vmem:[%s5 + $0x4] sm:$0xf]
        %v618 = vld [vmem:[%s5 + $0x8] sm:$0xf]
        %v619 = vld [vmem:[%s5 + $0xc] sm:$0xf]
        %v620 = vld [vmem:[%s5 + $0x10] sm:$0xf]
        %v621 = vld [vmem:[%s5 + $0x14] sm:$0xf]
        %v622 = vld [vmem:[%s5 + $0x18] sm:$0xf]
        %v623 = vld [vmem:[%s5 + $0x1c] sm:$0xf]
        %v624 = vld [vmem:[%s5 + $0x20] sm:$0xf]
        %v625 = vld [vmem:[%s5 + $0x24] sm:$0xf]
        %v626 = vld [vmem:[%s5 + $0x28] sm:$0xf]
        %v627 = vld [vmem:[%s5 + $0x2c] sm:$0xf]
        %v628 = vld [vmem:[%s5 + $0x30] sm:$0xf]
        %v629 = vld [vmem:[%s5 + $0x34] sm:$0xf]
        %v630 = vld [vmem:[%s5 + $0x38] sm:$0xf]
        %v631 = vld [vmem:[%s5 + $0x3c] sm:$0xf]
        %v632 = vld [vmem:[%s6] sm:$0x1]
        %v634 = vperm.slane %v632, 0
        %v652 = vunpack.c.l.b16 %v616
        %v653 = vunpack.c.l.b16 %v617
        %v654 = vunpack.c.l.b16 %v618
        %v655 = vunpack.c.l.b16 %v619
        %v656 = vunpack.c.l.b16 %v620
        %v657 = vunpack.c.l.b16 %v621
        %v658 = vunpack.c.l.b16 %v622
        %v659 = vunpack.c.l.b16 %v623
        %v660 = vunpack.c.l.b16 %v624
        %v661 = vunpack.c.l.b16 %v625
        %v662 = vunpack.c.l.b16 %v626
        %v663 = vunpack.c.l.b16 %v627
        %v664 = vunpack.c.l.b16 %v628
        %v665 = vunpack.c.l.b16 %v629
        %v666 = vunpack.c.l.b16 %v630
        %v667 = vunpack.c.l.b16 %v631
        %v668 = vpack.c.b16 %v653, %v652
        %v669 = vpack.c.b16 %v655, %v654
        %v670 = vpack.c.b16 %v657, %v656
        %v671 = vpack.c.b16 %v659, %v658
        %v672 = vpack.c.b16 %v661, %v660
        %v673 = vpack.c.b16 %v663, %v662
        %v674 = vpack.c.b16 %v665, %v664
        %v675 = vpack.c.b16 %v667, %v666
        %684 = vmatpush.bf16.msra.mxu0 %v675
        %685 = vmatpush.bf16.msra.mxu0 %v674
        %686 = vmatpush.bf16.msra.mxu0 %v673
        %687 = vmatpush.bf16.msra.mxu0 %v672
        %688 = vmatpush.bf16.msra.mxu0 %v671
        %689 = vmatpush.bf16.msra.mxu0 %v670
        %690 = vmatpush.bf16.msra.mxu0 %v669
        %691 = vmatpush.bf16.msra.mxu0 %v668
        %692 = vmatmul.bf16.gmra.mxu0 %v608
        %v693 = vpop.f32.mrf.mxu0
        %v694 = vadd.f32 %v634, %v693
        %v695 = vpop.f32.mrf.mxu0
        %v696 = vadd.f32 %v634, %v695
        %697 = vmatmul.bf16.gmra.mxu0 %v609
        %v698 = vpop.f32.mrf.mxu0
        %v699 = vadd.f32 %v634, %v698
        %v700 = vpop.f32.mrf.mxu0
        %v701 = vadd.f32 %v634, %v700
        %702 = vmatmul.bf16.gmra.mxu0 %v610
        %v703 = vpop.f32.mrf.mxu0
        %v704 = vadd.f32 %v634, %v703
        %v705 = vpop.f32.mrf.mxu0
        %v706 = vadd.f32 %v634, %v705
        %707 = vmatmul.bf16.gmra.mxu0 %v611
        %v708 = vpop.f32.mrf.mxu0
        %v709 = vadd.f32 %v634, %v708
        %v710 = vpop.f32.mrf.mxu0
        %v711 = vadd.f32 %v634, %v710
        %712 = vmatmul.bf16.gmra.mxu0 %v612
        %v713 = vpop.f32.mrf.mxu0
        %v714 = vadd.f32 %v634, %v713
        %v715 = vpop.f32.mrf.mxu0
        %v716 = vadd.f32 %v634, %v715
        %717 = vmatmul.bf16.gmra.mxu0 %v613
        %v718 = vpop.f32.mrf.mxu0
        %v719 = vadd.f32 %v634, %v718
        %v720 = vpop.f32.mrf.mxu0
        %v721 = vadd.f32 %v634, %v720
        %722 = vmatmul.bf16.gmra.mxu0 %v614
        %v723 = vpop.f32.mrf.mxu0
        %v724 = vadd.f32 %v634, %v723
        %v725 = vpop.f32.mrf.mxu0
        %v726 = vadd.f32 %v634, %v725
        %727 = vmatmul.bf16.gmra.mxu0 %v615
        %v728 = vpop.f32.mrf.mxu0
        %v729 = vadd.f32 %v634, %v728
        %v730 = vpop.f32.mrf.mxu0
        %v731 = vadd.f32 %v634, %v730
        %732 = vdwg.mxu0
        %vm733 = vcmask 130048
        %v734 = vsel %vm733, %v694, -inf
        %735 = vmax.xlane.f32.xlu0 %v734
        %v736 = vpop.xlane.xlu0 %735
        %v737 = vsel %vm733, %v696, -inf
        %738 = vmax.xlane.f32.xlu0 %v737
        %v739 = vpop.xlane.xlu0 %738
        %v740 = vsel %vm733, %v699, -inf
        %741 = vmax.xlane.f32.xlu0 %v740
        %v742 = vpop.xlane.xlu0 %741
        %v743 = vsel %vm733, %v701, -inf
        %744 = vmax.xlane.f32.xlu0 %v743
        %v745 = vpop.xlane.xlu0 %744
        %v746 = vsel %vm733, %v704, -inf
        %747 = vmax.xlane.f32.xlu0 %v746
        %v748 = vpop.xlane.xlu0 %747
        %v749 = vsel %vm733, %v706, -inf
        %750 = vmax.xlane.f32.xlu0 %v749
        %v751 = vpop.xlane.xlu0 %750
        %v752 = vsel %vm733, %v709, -inf
        %753 = vmax.xlane.f32.xlu0 %v752
        %v754 = vpop.xlane.xlu0 %753
        %v755 = vsel %vm733, %v711, -inf
        %756 = vmax.xlane.f32.xlu0 %v755
        %v757 = vpop.xlane.xlu0 %756
        %v758 = vsel %vm733, %v714, -inf
        %759 = vmax.xlane.f32.xlu0 %v758
        %v760 = vpop.xlane.xlu0 %759
        %v761 = vsel %vm733, %v716, -inf
        %762 = vmax.xlane.f32.xlu0 %v761
        %v763 = vpop.xlane.xlu0 %762
        %v764 = vsel %vm733, %v719, -inf
        %765 = vmax.xlane.f32.xlu0 %v764
        %v766 = vpop.xlane.xlu0 %765
        %v767 = vsel %vm733, %v721, -inf
        %768 = vmax.xlane.f32.xlu0 %v767
        %v769 = vpop.xlane.xlu0 %768
        %v770 = vsel %vm733, %v724, -inf
        %771 = vmax.xlane.f32.xlu0 %v770
        %v772 = vpop.xlane.xlu0 %771
        %v773 = vsel %vm733, %v726, -inf
        %774 = vmax.xlane.f32.xlu0 %v773
        %v775 = vpop.xlane.xlu0 %774
        %v776 = vsel %vm733, %v729, -inf
        %777 = vmax.xlane.f32.xlu0 %v776
        %v778 = vpop.xlane.xlu0 %777
        %v779 = vsel %vm733, %v731, -inf
        %780 = vmax.xlane.f32.xlu0 %v779
        %v781 = vpop.xlane.xlu0 %780
        %v782 = vsub.f32 %v694, %v736
        %v783 = vsub.f32 %v696, %v739
        %v784 = vsub.f32 %v699, %v742
        %v785 = vsub.f32 %v701, %v745
        %v786 = vsub.f32 %v704, %v748
        %v787 = vsub.f32 %v706, %v751
        %v788 = vsub.f32 %v709, %v754
        %v789 = vsub.f32 %v711, %v757
        %v790 = vsub.f32 %v714, %v760
        %v791 = vsub.f32 %v716, %v763
        %v792 = vsub.f32 %v719, %v766
        %v793 = vsub.f32 %v721, %v769
        %v794 = vsub.f32 %v724, %v772
        %v795 = vsub.f32 %v726, %v775
        %v796 = vsub.f32 %v729, %v778
        %v797 = vsub.f32 %v731, %v781
        %v798 = vmul.f32 %v782, 1.442695
        %v799 = vpow.pop %v798
        %v800 = vmul.f32 %v783, 1.442695
        %v801 = vpow.pop %v800
        %v802 = vmul.f32 %v784, 1.442695
        %v803 = vpow.pop %v802
        %v804 = vmul.f32 %v785, 1.442695
        %v805 = vpow.pop %v804
        %v806 = vmul.f32 %v786, 1.442695
        %v807 = vpow.pop %v806
        %v808 = vmul.f32 %v787, 1.442695
        %v809 = vpow.pop %v808
        %v810 = vmul.f32 %v788, 1.442695
        %v811 = vpow.pop %v810
        %v812 = vmul.f32 %v789, 1.442695
        %v813 = vpow.pop %v812
        %v814 = vmul.f32 %v790, 1.442695
        %v815 = vpow.pop %v814
        %v816 = vmul.f32 %v791, 1.442695
        %v817 = vpow.pop %v816
        %v818 = vmul.f32 %v792, 1.442695
        %v819 = vpow.pop %v818
        %v820 = vmul.f32 %v793, 1.442695
        %v821 = vpow.pop %v820
        %v822 = vmul.f32 %v794, 1.442695
        %v823 = vpow.pop %v822
        %v824 = vmul.f32 %v795, 1.442695
        %v825 = vpow.pop %v824
        %v826 = vmul.f32 %v796, 1.442695
        %v827 = vpow.pop %v826
        %v828 = vmul.f32 %v797, 1.442695
        %v829 = vpow.pop %v828
        %v830 = vsel %vm733, %v799, 0.0
        %831 = vadd.xlane.f32.xlu0 %v830
        %v832 = vpop.xlane.xlu0 %831
        %v833 = vsel %vm733, %v801, 0.0
        %834 = vadd.xlane.f32.xlu0 %v833
        %v835 = vpop.xlane.xlu0 %834
        %v836 = vsel %vm733, %v803, 0.0
        %837 = vadd.xlane.f32.xlu0 %v836
        %v838 = vpop.xlane.xlu0 %837
        %v839 = vsel %vm733, %v805, 0.0
        %840 = vadd.xlane.f32.xlu0 %v839
        %v841 = vpop.xlane.xlu0 %840
        %v842 = vsel %vm733, %v807, 0.0
        %843 = vadd.xlane.f32.xlu0 %v842
        %v844 = vpop.xlane.xlu0 %843
        %v845 = vsel %vm733, %v809, 0.0
        %846 = vadd.xlane.f32.xlu0 %v845
        %v847 = vpop.xlane.xlu0 %846
        %v848 = vsel %vm733, %v811, 0.0
        %849 = vadd.xlane.f32.xlu0 %v848
        %v850 = vpop.xlane.xlu0 %849
        %v851 = vsel %vm733, %v813, 0.0
        %852 = vadd.xlane.f32.xlu0 %v851
        %v853 = vpop.xlane.xlu0 %852
        %v854 = vsel %vm733, %v815, 0.0
        %855 = vadd.xlane.f32.xlu0 %v854
        %v856 = vpop.xlane.xlu0 %855
        %v857 = vsel %vm733, %v817, 0.0
        %858 = vadd.xlane.f32.xlu0 %v857
        %v859 = vpop.xlane.xlu0 %858
        %v860 = vsel %vm733, %v819, 0.0
        %861 = vadd.xlane.f32.xlu0 %v860
        %v862 = vpop.xlane.xlu0 %861
        %v863 = vsel %vm733, %v821, 0.0
        %864 = vadd.xlane.f32.xlu0 %v863
        %v865 = vpop.xlane.xlu0 %864
        %v866 = vsel %vm733, %v823, 0.0
        %867 = vadd.xlane.f32.xlu0 %v866
        %v868 = vpop.xlane.xlu0 %867
        %v869 = vsel %vm733, %v825, 0.0
        %870 = vadd.xlane.f32.xlu0 %v869
        %v871 = vpop.xlane.xlu0 %870
        %v872 = vsel %vm733, %v827, 0.0
        %873 = vadd.xlane.f32.xlu0 %v872
        %v874 = vpop.xlane.xlu0 %873
        %v875 = vsel %vm733, %v829, 0.0
        %876 = vadd.xlane.f32.xlu0 %v875
        %v877 = vpop.xlane.xlu0 %876
        %v878 = vrcp.pop %v832
        %v879 = vmul.f32 %v832, %v878
        %v880 = vsub.f32 1.0, %v879
        %v881 = vmul.f32 %v878, %v880
        %v882 = vadd.f32 %v878, %v881
        %vm883 = vweird.f32 %v832
        %vm884 = vweird.f32 %v878
        %vm885 = vmor %vm883, %vm884
        %v886 = vsel %vm885, %v878, %v882
        %v887 = vand.u32 2147483647, %v832
        %vm888 = vcmp.eq.f32.partialorder %v887, 8.507059e+37
        %v889 = vand.u32 %v832, 2147483648
        %v890 = vor.u32 1.1754944e-38, %v889
        %v891 = vsel %vm888, %v890, %v886
        %v892 = vmul.f32 %v799, %v891
        %v893 = vrcp.pop %v835
        %v894 = vmul.f32 %v835, %v893
        %v895 = vsub.f32 1.0, %v894
        %v896 = vmul.f32 %v893, %v895
        %v897 = vadd.f32 %v893, %v896
        %vm898 = vweird.f32 %v835
        %vm899 = vweird.f32 %v893
        %vm900 = vmor %vm898, %vm899
        %v901 = vsel %vm900, %v893, %v897
        %v902 = vand.u32 2147483647, %v835
        %vm903 = vcmp.eq.f32.partialorder %v902, 8.507059e+37
        %v904 = vand.u32 %v835, 2147483648
        %v905 = vor.u32 1.1754944e-38, %v904
        %v906 = vsel %vm903, %v905, %v901
        %v907 = vmul.f32 %v801, %v906
        %v908 = vrcp.pop %v838
        %v909 = vmul.f32 %v838, %v908
        %v910 = vsub.f32 1.0, %v909
        %v911 = vmul.f32 %v908, %v910
        %v912 = vadd.f32 %v908, %v911
        %vm913 = vweird.f32 %v838
        %vm914 = vweird.f32 %v908
        %vm915 = vmor %vm913, %vm914
        %v916 = vsel %vm915, %v908, %v912
        %v917 = vand.u32 2147483647, %v838
        %vm918 = vcmp.eq.f32.partialorder %v917, 8.507059e+37
        %v919 = vand.u32 %v838, 2147483648
        %v920 = vor.u32 1.1754944e-38, %v919
        %v921 = vsel %vm918, %v920, %v916
        %v922 = vmul.f32 %v803, %v921
        %v923 = vrcp.pop %v841
        %v924 = vmul.f32 %v841, %v923
        %v925 = vsub.f32 1.0, %v924
        %v926 = vmul.f32 %v923, %v925
        %v927 = vadd.f32 %v923, %v926
        %vm928 = vweird.f32 %v841
        %vm929 = vweird.f32 %v923
        %vm930 = vmor %vm928, %vm929
        %v931 = vsel %vm930, %v923, %v927
        %v932 = vand.u32 2147483647, %v841
        %vm933 = vcmp.eq.f32.partialorder %v932, 8.507059e+37
        %v934 = vand.u32 %v841, 2147483648
        %v935 = vor.u32 1.1754944e-38, %v934
        %v936 = vsel %vm933, %v935, %v931
        %v937 = vmul.f32 %v805, %v936
        %v938 = vrcp.pop %v844
        %v939 = vmul.f32 %v844, %v938
        %v940 = vsub.f32 1.0, %v939
        %v941 = vmul.f32 %v938, %v940
        %v942 = vadd.f32 %v938, %v941
        %vm943 = vweird.f32 %v844
        %vm944 = vweird.f32 %v938
        %vm945 = vmor %vm943, %vm944
        %v946 = vsel %vm945, %v938, %v942
        %v947 = vand.u32 2147483647, %v844
        %vm948 = vcmp.eq.f32.partialorder %v947, 8.507059e+37
        %v949 = vand.u32 %v844, 2147483648
        %v950 = vor.u32 1.1754944e-38, %v949
        %v951 = vsel %vm948, %v950, %v946
        %v952 = vmul.f32 %v807, %v951
        %v953 = vrcp.pop %v847
        %v954 = vmul.f32 %v847, %v953
        %v955 = vsub.f32 1.0, %v954
        %v956 = vmul.f32 %v953, %v955
        %v957 = vadd.f32 %v953, %v956
        %vm958 = vweird.f32 %v847
        %vm959 = vweird.f32 %v953
        %vm960 = vmor %vm958, %vm959
        %v961 = vsel %vm960, %v953, %v957
        %v962 = vand.u32 2147483647, %v847
        %vm963 = vcmp.eq.f32.partialorder %v962, 8.507059e+37
        %v964 = vand.u32 %v847, 2147483648
        %v965 = vor.u32 1.1754944e-38, %v964
        %v966 = vsel %vm963, %v965, %v961
        %v967 = vmul.f32 %v809, %v966
        %v968 = vrcp.pop %v850
        %v969 = vmul.f32 %v850, %v968
        %v970 = vsub.f32 1.0, %v969
        %v971 = vmul.f32 %v968, %v970
        %v972 = vadd.f32 %v968, %v971
        %vm973 = vweird.f32 %v850
        %vm974 = vweird.f32 %v968
        %vm975 = vmor %vm973, %vm974
        %v976 = vsel %vm975, %v968, %v972
        %v977 = vand.u32 2147483647, %v850
        %vm978 = vcmp.eq.f32.partialorder %v977, 8.507059e+37
        %v979 = vand.u32 %v850, 2147483648
        %v980 = vor.u32 1.1754944e-38, %v979
        %v981 = vsel %vm978, %v980, %v976
        %v982 = vmul.f32 %v811, %v981
        %v983 = vrcp.pop %v853
        %v984 = vmul.f32 %v853, %v983
        %v985 = vsub.f32 1.0, %v984
        %v986 = vmul.f32 %v983, %v985
        %v987 = vadd.f32 %v983, %v986
        %vm988 = vweird.f32 %v853
        %vm989 = vweird.f32 %v983
        %vm990 = vmor %vm988, %vm989
        %v991 = vsel %vm990, %v983, %v987
        %v992 = vand.u32 2147483647, %v853
        %vm993 = vcmp.eq.f32.partialorder %v992, 8.507059e+37
        %v994 = vand.u32 %v853, 2147483648
        %v995 = vor.u32 1.1754944e-38, %v994
        %v996 = vsel %vm993, %v995, %v991
        %v997 = vmul.f32 %v813, %v996
        %v998 = vrcp.pop %v856
        %v999 = vmul.f32 %v856, %v998
        %v1000 = vsub.f32 1.0, %v999
        %v1001 = vmul.f32 %v998, %v1000
        %v1002 = vadd.f32 %v998, %v1001
        %vm1003 = vweird.f32 %v856
        %vm1004 = vweird.f32 %v998
        %vm1005 = vmor %vm1003, %vm1004
        %v1006 = vsel %vm1005, %v998, %v1002
        %v1007 = vand.u32 2147483647, %v856
        %vm1008 = vcmp.eq.f32.partialorder %v1007, 8.507059e+37
        %v1009 = vand.u32 %v856, 2147483648
        %v1010 = vor.u32 1.1754944e-38, %v1009
        %v1011 = vsel %vm1008, %v1010, %v1006
        %v1012 = vmul.f32 %v815, %v1011
        %v1013 = vrcp.pop %v859
        %v1014 = vmul.f32 %v859, %v1013
        %v1015 = vsub.f32 1.0, %v1014
        %v1016 = vmul.f32 %v1013, %v1015
        %v1017 = vadd.f32 %v1013, %v1016
        %vm1018 = vweird.f32 %v859
        %vm1019 = vweird.f32 %v1013
        %vm1020 = vmor %vm1018, %vm1019
        %v1021 = vsel %vm1020, %v1013, %v1017
        %v1022 = vand.u32 2147483647, %v859
        %vm1023 = vcmp.eq.f32.partialorder %v1022, 8.507059e+37
        %v1024 = vand.u32 %v859, 2147483648
        %v1025 = vor.u32 1.1754944e-38, %v1024
        %v1026 = vsel %vm1023, %v1025, %v1021
        %v1027 = vmul.f32 %v817, %v1026
        %v1028 = vrcp.pop %v862
        %v1029 = vmul.f32 %v862, %v1028
        %v1030 = vsub.f32 1.0, %v1029
        %v1031 = vmul.f32 %v1028, %v1030
        %v1032 = vadd.f32 %v1028, %v1031
        %vm1033 = vweird.f32 %v862
        %vm1034 = vweird.f32 %v1028
        %vm1035 = vmor %vm1033, %vm1034
        %v1036 = vsel %vm1035, %v1028, %v1032
        %v1037 = vand.u32 2147483647, %v862
        %vm1038 = vcmp.eq.f32.partialorder %v1037, 8.507059e+37
        %v1039 = vand.u32 %v862, 2147483648
        %v1040 = vor.u32 1.1754944e-38, %v1039
        %v1041 = vsel %vm1038, %v1040, %v1036
        %v1042 = vmul.f32 %v819, %v1041
        %v1043 = vrcp.pop %v865
        %v1044 = vmul.f32 %v865, %v1043
        %v1045 = vsub.f32 1.0, %v1044
        %v1046 = vmul.f32 %v1043, %v1045
        %v1047 = vadd.f32 %v1043, %v1046
        %vm1048 = vweird.f32 %v865
        %vm1049 = vweird.f32 %v1043
        %vm1050 = vmor %vm1048, %vm1049
        %v1051 = vsel %vm1050, %v1043, %v1047
        %v1052 = vand.u32 2147483647, %v865
        %vm1053 = vcmp.eq.f32.partialorder %v1052, 8.507059e+37
        %v1054 = vand.u32 %v865, 2147483648
        %v1055 = vor.u32 1.1754944e-38, %v1054
        %v1056 = vsel %vm1053, %v1055, %v1051
        %v1057 = vmul.f32 %v821, %v1056
        %v1058 = vrcp.pop %v868
        %v1059 = vmul.f32 %v868, %v1058
        %v1060 = vsub.f32 1.0, %v1059
        %v1061 = vmul.f32 %v1058, %v1060
        %v1062 = vadd.f32 %v1058, %v1061
        %vm1063 = vweird.f32 %v868
        %vm1064 = vweird.f32 %v1058
        %vm1065 = vmor %vm1063, %vm1064
        %v1066 = vsel %vm1065, %v1058, %v1062
        %v1067 = vand.u32 2147483647, %v868
        %vm1068 = vcmp.eq.f32.partialorder %v1067, 8.507059e+37
        %v1069 = vand.u32 %v868, 2147483648
        %v1070 = vor.u32 1.1754944e-38, %v1069
        %v1071 = vsel %vm1068, %v1070, %v1066
        %v1072 = vmul.f32 %v823, %v1071
        %v1073 = vrcp.pop %v871
        %v1074 = vmul.f32 %v871, %v1073
        %v1075 = vsub.f32 1.0, %v1074
        %v1076 = vmul.f32 %v1073, %v1075
        %v1077 = vadd.f32 %v1073, %v1076
        %vm1078 = vweird.f32 %v871
        %vm1079 = vweird.f32 %v1073
        %vm1080 = vmor %vm1078, %vm1079
        %v1081 = vsel %vm1080, %v1073, %v1077
        %v1082 = vand.u32 2147483647, %v871
        %vm1083 = vcmp.eq.f32.partialorder %v1082, 8.507059e+37
        %v1084 = vand.u32 %v871, 2147483648
        %v1085 = vor.u32 1.1754944e-38, %v1084
        %v1086 = vsel %vm1083, %v1085, %v1081
        %v1087 = vmul.f32 %v825, %v1086
        %v1088 = vrcp.pop %v874
        %v1089 = vmul.f32 %v874, %v1088
        %v1090 = vsub.f32 1.0, %v1089
        %v1091 = vmul.f32 %v1088, %v1090
        %v1092 = vadd.f32 %v1088, %v1091
        %vm1093 = vweird.f32 %v874
        %vm1094 = vweird.f32 %v1088
        %vm1095 = vmor %vm1093, %vm1094
        %v1096 = vsel %vm1095, %v1088, %v1092
        %v1097 = vand.u32 2147483647, %v874
        %vm1098 = vcmp.eq.f32.partialorder %v1097, 8.507059e+37
        %v1099 = vand.u32 %v874, 2147483648
        %v1100 = vor.u32 1.1754944e-38, %v1099
        %v1101 = vsel %vm1098, %v1100, %v1096
        %v1102 = vmul.f32 %v827, %v1101
        %v1103 = vrcp.pop %v877
        %v1104 = vmul.f32 %v877, %v1103
        %v1105 = vsub.f32 1.0, %v1104
        %v1106 = vmul.f32 %v1103, %v1105
        %v1107 = vadd.f32 %v1103, %v1106
        %vm1108 = vweird.f32 %v877
        %vm1109 = vweird.f32 %v1103
        %vm1110 = vmor %vm1108, %vm1109
        %v1111 = vsel %vm1110, %v1103, %v1107
        %v1112 = vand.u32 2147483647, %v877
        %vm1113 = vcmp.eq.f32.partialorder %v1112, 8.507059e+37
        %v1114 = vand.u32 %v877, 2147483648
        %v1115 = vor.u32 1.1754944e-38, %v1114
        %v1116 = vsel %vm1113, %v1115, %v1111
        %v1117 = vmul.f32 %v829, %v1116
        %1118 = vst.msk [vmem:[%s280] sm:$0xff] %vm733, %v892
        %1119 = vst.msk [vmem:[%s280 + $0x8] sm:$0xff] %vm733, %v907
        %1120 = vst.msk [vmem:[%s280 + $0x10] sm:$0xff] %vm733, %v922
        %1121 = vst.msk [vmem:[%s280 + $0x18] sm:$0xff] %vm733, %v937
        %1122 = vst.msk [vmem:[%s280 + $0x20] sm:$0xff] %vm733, %v952
        %1123 = vst.msk [vmem:[%s280 + $0x28] sm:$0xff] %vm733, %v967
        %1124 = vst.msk [vmem:[%s280 + $0x30] sm:$0xff] %vm733, %v982
        %1125 = vst.msk [vmem:[%s280 + $0x38] sm:$0xff] %vm733, %v997
        %1126 = vst.msk [vmem:[%s280 + $0x40] sm:$0xff] %vm733, %v1012
        %1127 = vst.msk [vmem:[%s280 + $0x48] sm:$0xff] %vm733, %v1027
        %1128 = vst.msk [vmem:[%s280 + $0x50] sm:$0xff] %vm733, %v1042
        %1129 = vst.msk [vmem:[%s280 + $0x58] sm:$0xff] %vm733, %v1057
        %1130 = vst.msk [vmem:[%s280 + $0x60] sm:$0xff] %vm733, %v1072
        %1131 = vst.msk [vmem:[%s280 + $0x68] sm:$0xff] %vm733, %v1087
        %1132 = vst.msk [vmem:[%s280 + $0x70] sm:$0xff] %vm733, %v1102
        %1133 = vst.msk [vmem:[%s280 + $0x78] sm:$0xff] %vm733, %v1117
        %s1134 = sand.u32 %s178, 1
        %s1135 = sand.u32 %s178, 1
        %s1136 = smul.addr %s1135, 128
        %s1137 = scalar_lea.vmem [#allocation2], %s1136
        // Predicated region
        $region49: #{mlp_forward.1} parent=47 // pred_check
          %p1138 = pneg %p188
        $region50: #{mlp_forward.1} parent=47 // pred_check_branch
          %1140 = sbr.rel (%p1138) target = $region52
        $region51: #{mlp_forward.1} parent=47 // pred_region
          %s1141 = smul.u32 16, %s18
          %s1142 = ssub.s32 25, %s1141
          %p1143 = scmp.lt.s32.totalorder %s1142, 16
          %s1144 = scalar_select %p1143, %s1142, 16
          %s1145 = smul.u32 8, %s1144
          %p1146 = scmp.ne.s32.totalorder 0, %s1145
          %s1147 = smul.addr %s1141, 8
          %s1148 = scalar_lea.vmem %s7, %s1147
          // Predicated region
          $region53: #{mlp_forward.1} parent=51 // pred_check
            %p1149 = pneg %p1146
          $region54: #{mlp_forward.1} parent=51 // pred_check_branch
            %1151 = sbr.rel (%p1149) target = $region56
          $region55: #{mlp_forward.1} parent=51 // pred_region
            // Predicated region
            $region57: #{mlp_forward.1} parent=55 // pred_check
              _
            $region58: #{mlp_forward.1} parent=55 // pred_check_branch
              %1153 = sbr.rel (0) target = $region60
            $region59: #{mlp_forward.1} parent=55 // pred_region
              // Predicated region
              $region79: #{mlp_forward.1} parent=59 // pred_check
                _
              $region80: #{mlp_forward.1} parent=59 // pred_check_branch
                %1233 = sbr.rel (0) target = $region82
              $region81: #{mlp_forward.1} parent=59 // pred_region
                %s1234 = sshrl.u32 %s1144, 4
                // While loop
                $region83: #{mlp_forward.1} parent=81 // loop_pre_header
                  _
                $region84: #{mlp_forward.1} parent=81 // loop_header
                  %s1236 = sphi 0, %s1238
                  %p1237 = scmp.ge.s32.totalorder %s1236, %s1234
                  %s1241 = sphi 0, %s1278
                  %s1242 = sphi %s1137, %s1281
                  %s1243 = sphi %s1148, %s1282
                $region85: #{mlp_forward.1} parent=81 // loop_header_branch
                  %1240 = sbr.rel (%p1237) target = $region89
                $region86: #{mlp_forward.1} parent=81 // loop_body
                  %v1244 = vld [vmem:[%s1242] sm:$0xff]
                  %1245 = vst [vmem:[%s1243] sm:$0xff] %v1244
                  %v1246 = vld [vmem:[%s1242 + $0x8] sm:$0xff]
                  %1247 = vst [vmem:[%s1243 + $0x8] sm:$0xff] %v1246
                  %v1248 = vld [vmem:[%s1242 + $0x10] sm:$0xff]
                  %1249 = vst [vmem:[%s1243 + $0x10] sm:$0xff] %v1248
                  %v1250 = vld [vmem:[%s1242 + $0x18] sm:$0xff]
                  %1251 = vst [vmem:[%s1243 + $0x18] sm:$0xff] %v1250
                  %v1252 = vld [vmem:[%s1242 + $0x20] sm:$0xff]
                  %1253 = vst [vmem:[%s1243 + $0x20] sm:$0xff] %v1252
                  %v1254 = vld [vmem:[%s1242 + $0x28] sm:$0xff]
                  %1255 = vst [vmem:[%s1243 + $0x28] sm:$0xff] %v1254
                  %v1256 = vld [vmem:[%s1242 + $0x30] sm:$0xff]
                  %1257 = vst [vmem:[%s1243 + $0x30] sm:$0xff] %v1256
                  %v1258 = vld [vmem:[%s1242 + $0x38] sm:$0xff]
                  %1259 = vst [vmem:[%s1243 + $0x38] sm:$0xff] %v1258
                  %v1260 = vld [vmem:[%s1242 + $0x40] sm:$0xff]
                  %1261 = vst [vmem:[%s1243 + $0x40] sm:$0xff] %v1260
                  %v1262 = vld [vmem:[%s1242 + $0x48] sm:$0xff]
                  %1263 = vst [vmem:[%s1243 + $0x48] sm:$0xff] %v1262
                  %v1264 = vld [vmem:[%s1242 + $0x50] sm:$0xff]
                  %1265 = vst [vmem:[%s1243 + $0x50] sm:$0xff] %v1264
                  %v1266 = vld [vmem:[%s1242 + $0x58] sm:$0xff]
                  %1267 = vst [vmem:[%s1243 + $0x58] sm:$0xff] %v1266
                  %v1268 = vld [vmem:[%s1242 + $0x60] sm:$0xff]
                  %1269 = vst [vmem:[%s1243 + $0x60] sm:$0xff] %v1268
                  %v1270 = vld [vmem:[%s1242 + $0x68] sm:$0xff]
                  %1271 = vst [vmem:[%s1243 + $0x68] sm:$0xff] %v1270
                  %v1272 = vld [vmem:[%s1242 + $0x70] sm:$0xff]
                  %1273 = vst [vmem:[%s1243 + $0x70] sm:$0xff] %v1272
                  %v1274 = vld [vmem:[%s1242 + $0x78] sm:$0xff]
                  %1275 = vst [vmem:[%s1243 + $0x78] sm:$0xff] %v1274
                  %s1276 = sadd.s32 1, %s1241
                  %p1277 = scmp.ge.s32.totalorder %s1276, %s1234
                  %s1278 = scalar_select %p1277, 0, %s1276
                  %s1279 = smul.u32 %s1278, 128
                  %s1280 = smul.u32 %s1278, 128
                  %s1281 = scalar_lea.vmem %s1137, %s1279 [#allocation2]
                  %s1282 = scalar_lea.vmem %s1148, %s1280
                $region87: #{mlp_forward.1} parent=81 // loop_footer
                  %s1238 = sadd.s32 %s1236, 1
                $region88: #{mlp_forward.1} parent=81 // loop_footer_branch
                  %1235 = sbr.rel target = $region84
                $region89: #{mlp_forward.1} parent=81 // loop_exit
                  _
                %s1283 = sshrl.u32 %s1144, 4
                %s1284 = sand.u32 %s1144, 15
                %s1285 = smul.u32 %s1283, 16
                %s1286 = smul.u32 8, %s1285
                %s1287 = scalar_lea.vmem %s1137, %s1286 [#allocation2]
                %s1288 = smul.u32 8, %s1285
                %s1289 = scalar_lea.vmem %s1148, %s1288
                // While loop
                $region90: #{mlp_forward.1} parent=81 // loop_pre_header
                  _
                $region91: #{mlp_forward.1} parent=81 // loop_header
                  %s1291 = sphi 0, %s1293
                  %p1292 = scmp.ge.s32.totalorder %s1291, %s1284
                  %s1296 = sphi 0, %s1303
                  %s1297 = sphi %s1287, %s1306
                  %s1298 = sphi %s1289, %s1307
                $region92: #{mlp_forward.1} parent=81 // loop_header_branch
                  %1295 = sbr.rel (%p1292) target = $region96
                $region93: #{mlp_forward.1} parent=81 // loop_body
                  %v1299 = vld [vmem:[%s1297] sm:$0xff]
                  %1300 = vst [vmem:[%s1298] sm:$0xff] %v1299
                  %s1301 = sadd.s32 1, %s1296
                  %p1302 = scmp.ge.s32.totalorder %s1301, %s1284
                  %s1303 = scalar_select %p1302, 0, %s1301
                  %s1304 = smul.u32 %s1303, 8
                  %s1305 = smul.u32 %s1303, 8
                  %s1306 = scalar_lea.vmem %s1287, %s1304 [#allocation2]
                  %s1307 = scalar_lea.vmem %s1289, %s1305
                $region94: #{mlp_forward.1} parent=81 // loop_footer
                  %s1293 = sadd.s32 %s1291, 1
                $region95: #{mlp_forward.1} parent=81 // loop_footer_branch
                  %1290 = sbr.rel target = $region91
                $region96: #{mlp_forward.1} parent=81 // loop_exit
                  _
              $region82: #{mlp_forward.1} parent=59 // pred_fallthru
                _
              // Predicated region
              $region97: #{mlp_forward.1} parent=59 // pred_check
                _
              $region98: #{mlp_forward.1} parent=59 // pred_check_branch
                %1309 = sbr.rel target = $region100
              $region99: #{mlp_forward.1} parent=59 // pred_region
                _
              $region100: #{mlp_forward.1} parent=59 // pred_fallthru
                _
            $region60: #{mlp_forward.1} parent=55 // pred_fallthru
              _
            // Predicated region
            $region61: #{mlp_forward.1} parent=55 // pred_check
              _
            $region62: #{mlp_forward.1} parent=55 // pred_check_branch
              %1155 = sbr.rel target = $region64
            $region63: #{mlp_forward.1} parent=55 // pred_region
              %s1157 = ssub.s32 256, 1
              %s1158 = sshrl.u32 %s1144, 4
              // While loop
              $region65: #{mlp_forward.1} parent=63 // loop_pre_header
                _
              $region66: #{mlp_forward.1} parent=63 // loop_header
                %s1160 = sphi 0, %s1162
                %p1161 = scmp.ge.s32.totalorder %s1160, %s1158
                %s1165 = sphi 0, %s1202
                %s1166 = sphi %s1137, %s1205
                %s1167 = sphi %s1148, %s1206
              $region67: #{mlp_forward.1} parent=63 // loop_header_branch
                %1164 = sbr.rel (%p1161) target = $region71
              $region68: #{mlp_forward.1} parent=63 // loop_body
                %v1168 = vld [vmem:[%s1166] sm:%s1157]
                %1169 = vst [vmem:[%s1167] sm:%s1157] %v1168
                %v1170 = vld [vmem:[%s1166 + $0x8] sm:%s1157]
                %1171 = vst [vmem:[%s1167 + $0x8] sm:%s1157] %v1170
                %v1172 = vld [vmem:[%s1166 + $0x10] sm:%s1157]
                %1173 = vst [vmem:[%s1167 + $0x10] sm:%s1157] %v1172
                %v1174 = vld [vmem:[%s1166 + $0x18] sm:%s1157]
                %1175 = vst [vmem:[%s1167 + $0x18] sm:%s1157] %v1174
                %v1176 = vld [vmem:[%s1166 + $0x20] sm:%s1157]
                %1177 = vst [vmem:[%s1167 + $0x20] sm:%s1157] %v1176
                %v1178 = vld [vmem:[%s1166 + $0x28] sm:%s1157]
                %1179 = vst [vmem:[%s1167 + $0x28] sm:%s1157] %v1178
                %v1180 = vld [vmem:[%s1166 + $0x30] sm:%s1157]
                %1181 = vst [vmem:[%s1167 + $0x30] sm:%s1157] %v1180
                %v1182 = vld [vmem:[%s1166 + $0x38] sm:%s1157]
                %1183 = vst [vmem:[%s1167 + $0x38] sm:%s1157] %v1182
                %v1184 = vld [vmem:[%s1166 + $0x40] sm:%s1157]
                %1185 = vst [vmem:[%s1167 + $0x40] sm:%s1157] %v1184
                %v1186 = vld [vmem:[%s1166 + $0x48] sm:%s1157]
                %1187 = vst [vmem:[%s1167 + $0x48] sm:%s1157] %v1186
                %v1188 = vld [vmem:[%s1166 + $0x50] sm:%s1157]
                %1189 = vst [vmem:[%s1167 + $0x50] sm:%s1157] %v1188
                %v1190 = vld [vmem:[%s1166 + $0x58] sm:%s1157]
                %1191 = vst [vmem:[%s1167 + $0x58] sm:%s1157] %v1190
                %v1192 = vld [vmem:[%s1166 + $0x60] sm:%s1157]
                %1193 = vst [vmem:[%s1167 + $0x60] sm:%s1157] %v1192
                %v1194 = vld [vmem:[%s1166 + $0x68] sm:%s1157]
                %1195 = vst [vmem:[%s1167 + $0x68] sm:%s1157] %v1194
                %v1196 = vld [vmem:[%s1166 + $0x70] sm:%s1157]
                %1197 = vst [vmem:[%s1167 + $0x70] sm:%s1157] %v1196
                %v1198 = vld [vmem:[%s1166 + $0x78] sm:%s1157]
                %1199 = vst [vmem:[%s1167 + $0x78] sm:%s1157] %v1198
                %s1200 = sadd.s32 1, %s1165
                %p1201 = scmp.ge.s32.totalorder %s1200, %s1158
                %s1202 = scalar_select %p1201, 0, %s1200
                %s1203 = smul.u32 %s1202, 128
                %s1204 = smul.u32 %s1202, 128
                %s1205 = scalar_lea.vmem %s1137, %s1203 [#allocation2]
                %s1206 = scalar_lea.vmem %s1148, %s1204
              $region69: #{mlp_forward.1} parent=63 // loop_footer
                %s1162 = sadd.s32 %s1160, 1
              $region70: #{mlp_forward.1} parent=63 // loop_footer_branch
                %1159 = sbr.rel target = $region66
              $region71: #{mlp_forward.1} parent=63 // loop_exit
                _
              %s1207 = sshrl.u32 %s1144, 4
              %s1208 = sand.u32 %s1144, 15
              %s1209 = smul.u32 %s1207, 16
              %s1210 = smul.u32 8, %s1209
              %s1211 = scalar_lea.vmem %s1137, %s1210 [#allocation2]
              %s1212 = smul.u32 8, %s1209
              %s1213 = scalar_lea.vmem %s1148, %s1212
              // While loop
              $region72: #{mlp_forward.1} parent=63 // loop_pre_header
                _
              $region73: #{mlp_forward.1} parent=63 // loop_header
                %s1215 = sphi 0, %s1217
                %p1216 = scmp.ge.s32.totalorder %s1215, %s1208
                %s1220 = sphi 0, %s1227
                %s1221 = sphi %s1211, %s1230
                %s1222 = sphi %s1213, %s1231
              $region74: #{mlp_forward.1} parent=63 // loop_header_branch
                %1219 = sbr.rel (%p1216) target = $region78
              $region75: #{mlp_forward.1} parent=63 // loop_body
                %v1223 = vld [vmem:[%s1221] sm:%s1157]
                %1224 = vst [vmem:[%s1222] sm:%s1157] %v1223
                %s1225 = sadd.s32 1, %s1220
                %p1226 = scmp.ge.s32.totalorder %s1225, %s1208
                %s1227 = scalar_select %p1226, 0, %s1225
                %s1228 = smul.u32 %s1227, 8
                %s1229 = smul.u32 %s1227, 8
                %s1230 = scalar_lea.vmem %s1211, %s1228 [#allocation2]
                %s1231 = scalar_lea.vmem %s1213, %s1229
              $region76: #{mlp_forward.1} parent=63 // loop_footer
                %s1217 = sadd.s32 %s1215, 1
              $region77: #{mlp_forward.1} parent=63 // loop_footer_branch
                %1214 = sbr.rel target = $region73
              $region78: #{mlp_forward.1} parent=63 // loop_exit
                _
            $region64: #{mlp_forward.1} parent=55 // pred_fallthru
              _
          $region56: #{mlp_forward.1} parent=51 // pred_fallthru
            _
          %1310 = vnop
        $region52: #{mlp_forward.1} parent=47 // pred_fallthru
          _
      $region48: #{mlp_forward.1} parent=5 // pred_fallthru
        _
      %p1311 = scmp.le.s32.totalorder 2, %s13
      // Predicated region
      $region101: #{mlp_forward.1} parent=5 // pred_check
        %p1312 = pneg %p1311
      $region102: #{mlp_forward.1} parent=5 // pred_check_branch
        %1314 = sbr.rel (%p1312) target = $region104
      $region103: #{mlp_forward.1} parent=5 // pred_region
        %s1315 = ssub.s32 %s13, 2
        // Predicated region
        $region105: #{mlp_forward.1} parent=103 // pred_check
          %p1316 = pneg %p194
        $region106: #{mlp_forward.1} parent=103 // pred_check_branch
          %1318 = sbr.rel (%p1316) target = $region108
        $region107: #{mlp_forward.1} parent=103 // pred_region
          %s1319 = sand.u32 %s179, 1
          %s1320 = sand.u32 %s179, 1
          %s1321 = smul.addr %s1320, 128
          %s1322 = scalar_lea.vmem [#allocation2], %s1321
        $region108: #{mlp_forward.1} parent=103 // pred_fallthru
          _
      $region104: #{mlp_forward.1} parent=5 // pred_fallthru
        _
    $region6: #{mlp_forward.1} parent=1 // loop_footer
      %s17 = sadd.s32 1, %s13
    $region7: #{mlp_forward.1} parent=1 // loop_footer_branch
      %12 = sbr.rel target = $region3
    $region8: #{mlp_forward.1} parent=1 // loop_exit
      _

</llo_original>
